<compile_context>
chip_gen: v5e
topology: v5e:2x2
jax: 0.10.0
libtpu: 0.0.40
codegen_flags: <defaults>
</compile_context>

<pallas_src>
import functools

import jax
import jax.numpy as jnp
from jax.experimental import pallas as pl
from jax.experimental.pallas import tpu as pltpu


def _early_fusion_kernel(offsets, sizes, *refs):
    """Pack all modality blocks into the fused VMEM output block.

    refs = (in_ref_0, ..., in_ref_{N-1}, out_ref).  offsets/sizes are static
    Python ints, so every slice below is a compile-time static slice of the
    VMEM output tile.  The dtype cast (if any) is fused into the store.
    """
    *in_refs, out_ref = refs
    for in_ref, off, sz in zip(in_refs, offsets, sizes):
        out_ref[:, off:off + sz] = in_ref[...].astype(out_ref.dtype)


def _pick_batch_tile(batch, row_bytes, vmem_budget_bytes):
    """Largest batch tile that (a) fits the VMEM budget with double-buffered
    inputs + output and (b) satisfies the (8,128) constraint (multiple of 8
    dividing `batch`, or the full batch)."""
    # ~2x for inputs+output, ~2x for double buffering.
    cap = max(1, vmem_budget_bytes // max(1, 4 * row_bytes))
    if batch <= cap:
        return batch
    t = (cap // 8) * 8
    while t >= 8:
        if batch % t == 0:
            return t
        t -= 8
    return batch  # fall back to a single full-batch block


def early_fusion(data, out_dtype=None, vmem_budget_bytes=8 * 1024 * 1024):
    """Early fusion: concat of row-major-flattened modalities along features.

    data: list of jnp arrays, each with leading batch dim B.
    Returns [B, sum_i prod(data[i].shape[1:])].
    """
    assert len(data) >= 1
    batch = int(data[0].shape[0])
    for t in data:
        assert int(t.shape[0]) == batch, "all modalities must share batch dim"

    if out_dtype is None:
        # Type promotion (never a silent downcast, unlike casting to data[0]).
        out_dtype = jnp.result_type(*[t.dtype for t in data])
    out_dtype = jnp.dtype(out_dtype)

    # Flatten (metadata-only reshape, no HBM pass) and drop zero-width inputs.
    flat = [jnp.reshape(t, (batch, -1)) for t in data]
    flat = [f for f in flat if int(f.shape[1]) > 0]

    total = sum(int(f.shape[1]) for f in flat)
    if total == 0:
        return jnp.zeros((batch, 0), dtype=out_dtype)

    sizes = tuple(int(f.shape[1]) for f in flat)
    offsets = []
    acc = 0
    for s in sizes:
        offsets.append(acc)
        acc += s
    offsets = tuple(offsets)

    # Per-row bytes moved through VMEM (all inputs + the fused output row).
    row_bytes = sum(s * f.dtype.itemsize for s, f in zip(sizes, flat)) \
        + total * out_dtype.itemsize
    tb = _pick_batch_tile(batch, row_bytes, vmem_budget_bytes)
    grid = (pl.cdiv(batch, tb),)

    kernel = functools.partial(_early_fusion_kernel, offsets, sizes)

    in_specs = [
        pl.BlockSpec((tb, s), lambda b: (b, 0)) for s in sizes
    ]
    out_spec = pl.BlockSpec((tb, total), lambda b: (b, 0))

    bytes_accessed = sum(int(f.size) * f.dtype.itemsize for f in flat) \
        + batch * total * out_dtype.itemsize

    fused = pl.pallas_call(
        kernel,
        grid=grid,
        in_specs=in_specs,
        out_specs=out_spec,
        out_shape=jax.ShapeDtypeStruct((batch, total), out_dtype),
        compiler_params=pltpu.CompilerParams(
            dimension_semantics=("parallel",),
        ),
        cost_estimate=pl.CostEstimate(
            flops=0,
            transcendentals=0,
            bytes_accessed=bytes_accessed,
        ),
    )(*flat)
    return fused


if __name__ == "__main__":
    key = jax.random.PRNGKey(0)
    k_img, k_tab = jax.random.split(key)

    # Two modalities: an image modality (NCHW) and a tabular modality.
    x_img = jax.random.normal(k_img, (2, 4, 16, 16), dtype=jnp.float32)
    x_tab = jax.random.normal(k_tab, (2, 32), dtype=jnp.float32)

    out = early_fusion([x_img, x_tab])
    out = jax.block_until_ready(out)

    # Reference check (plain JAX concat of flattened modalities).
    ref = jnp.concatenate([x_img.reshape(2, -1), x_tab.reshape(2, -1)], axis=1)
    assert out.shape == (2, 4 * 16 * 16 + 32)
    assert out.dtype == jnp.float32
    assert jnp.allclose(out, ref)

    print("KERNEL_OK")
</pallas_src>

<mosaic_0001>
module attributes {stable_mosaic.version = 11 : i64} {
  func.func @_early_fusion_kernel(%arg0: i32, %arg1: memref<2x1024xf32, #tpu.memory_space<vmem>>, %arg2: memref<2x32xf32, #tpu.memory_space<vmem>>, %arg3: memref<2x1056xf32, #tpu.memory_space<vmem>>) attributes {dimension_semantics = [#tpu.dimension_semantics<parallel>], iteration_bounds = array<i64: 1>, scalar_prefetch = 0 : i64, scratch_operands = 0 : i64, tpu.core_type = #tpu.core_type<tc>, window_params = [{transform_indices = @transform_0, window_bounds = array<i64: 2, 1024>}, {transform_indices = @transform_1, window_bounds = array<i64: 2, 32>}, {transform_indices = @transform_2, window_bounds = array<i64: 2, 1056>}]} {
    %c0 = arith.constant 0 : index
    %c0_0 = arith.constant 0 : index
    %0 = vector.load %arg1[%c0, %c0_0] : memref<2x1024xf32, #tpu.memory_space<vmem>>, vector<2x1024xf32>
    %c0_1 = arith.constant 0 : index
    %c0_2 = arith.constant 0 : index
    %1 = vector.load %arg3[%c0_1, %c0_2] : memref<2x1056xf32, #tpu.memory_space<vmem>>, vector<2x1024xf32>
    tpu.vector_store %arg3[%c0_1, %c0_2], %0 {strides = array<i32>} : memref<2x1056xf32, #tpu.memory_space<vmem>>, vector<2x1024xf32>,
    %c0_3 = arith.constant 0 : index
    %c0_4 = arith.constant 0 : index
    %2 = vector.load %arg2[%c0_3, %c0_4] : memref<2x32xf32, #tpu.memory_space<vmem>>, vector<2x32xf32>
    %c0_5 = arith.constant 0 : index
    %c1024 = arith.constant 1024 : index
    %3 = vector.load %arg3[%c0_5, %c1024] : memref<2x1056xf32, #tpu.memory_space<vmem>>, vector<2x32xf32>
    tpu.vector_store %arg3[%c0_5, %c1024], %2 {strides = array<i32>} : memref<2x1056xf32, #tpu.memory_space<vmem>>, vector<2x32xf32>,
    return
  }
  func.func @transform_0(%arg0: i32) -> (i32, i32) {
    %c0_i32 = arith.constant 0 : i32
    %c0_i32_0 = arith.constant 0 : i32
    return %arg0, %c0_i32 : i32, i32
  }
  func.func @transform_1(%arg0: i32) -> (i32, i32) {
    %c0_i32 = arith.constant 0 : i32
    %c0_i32_0 = arith.constant 0 : i32
    return %arg0, %c0_i32 : i32, i32
  }
  func.func @transform_2(%arg0: i32) -> (i32, i32) {
    %c0_i32 = arith.constant 0 : i32
    %c0_i32_0 = arith.constant 0 : i32
    return %arg0, %c0_i32 : i32, i32
  }
}

</mosaic_0001>

<llo_original>
// kernel: tpu_custom_call.1
$region0: #{tpu_custom_call.1}
  #allocation0 [shape = 'u32[]', space=smem, size = 0x4, offset = 0x4, fixed_abs, tag = 'smem constant byte address 0x4 - core index']
  #allocation1 [shape = 'u32[72,128]{1,0:T(1,128)}', space=vmem, size = 0x9000, scoped, tag = 'internal scratch']
  %s0 = inlined_call_operand.hbm [shape: f32[2,1024], index: 0, kind: input, shape index: {}]
  %s1 = inlined_call_operand.hbm [shape: f32[2,32], index: 1, kind: input, shape index: {}]
  %s2 = inlined_call_operand.hbm [shape: f32[2,1056], index: 2, kind: output, shape index: {}]
  %s3 = sld [smem:[#allocation0]]
  $region26: #{tpu_custom_call.1} parent=0
    _
  %s5 = ssub.s32 1, %s3
  %s6 = scalar_select 0, %s5, %s3
  $region1: #{tpu_custom_call.1} parent=0
    #allocation2 [shape = 'u8[8192]{0}', space=vmem, size = 0x2000, scoped, tag = 'input window, operand 0, single buffered']
    #allocation3 [shape = 's32[1]{0}', space=sflag, size = 0x4, scoped, tag = 'scoped memory for tpu_custom_call.1']
    #allocation4 [shape = 's32[1]{0}', space=sflag, size = 0x4, scoped, tag = 'scoped memory for tpu_custom_call.1']
    #allocation5 [shape = 'u8[1024]{0}', space=vmem, size = 0x400, scoped, tag = 'input window, operand 1, single buffered']
    #allocation6 [shape = 's32[1]{0}', space=sflag, size = 0x4, scoped, tag = 'scoped memory for tpu_custom_call.1']
    #allocation7 [shape = 'u8[9216]{0}', space=vmem, size = 0x2400, scoped, tag = 'output window, operand 0, single buffered']
    %7 = vsyncpa [#allocation3], 0
    %8 = vsyncpa [#allocation6], 0
    %9 = vsyncpa [#allocation4], 0
    // Predicated region
    $region2: #{tpu_custom_call.1} parent=1 // pred_check
      _
    $region3: #{tpu_custom_call.1} parent=1 // pred_check_branch
      %11 = sbr.rel (0) target = $region5
    $region4: #{tpu_custom_call.1} parent=1 // pred_region
      %13 = vsyncadd [#allocation3], 0
      %s15 = sshll.u32 %s0, 4
      %s16 = int_to_ptr.hbm [resolvable:$true] %s15
      %s17 = sshll.u32 [#allocation2], 4
      %s18 = int_to_ptr.vmem [resolvable:$true] %s17
      %20 = dma.hbm_to_vmem [thread:$0]  %s16, 256, %s18, [#allocation3]
    $region5: #{tpu_custom_call.1} parent=1 // pred_fallthru
      _
    // Predicated region
    $region6: #{tpu_custom_call.1} parent=1 // pred_check
      _
    $region7: #{tpu_custom_call.1} parent=1 // pred_check_branch
      %22 = sbr.rel (0) target = $region9
    $region8: #{tpu_custom_call.1} parent=1 // pred_region
      %24 = vsyncadd [#allocation6], 0
      %s26 = sshll.u32 %s1, 4
      %s27 = int_to_ptr.hbm [resolvable:$true] %s26
      %s28 = sshll.u32 [#allocation5], 4
      %s29 = int_to_ptr.vmem [resolvable:$true] %s28
      %31 = dma.hbm_to_vmem [thread:$0]  %s27, 32, %s29, [#allocation6]
    $region9: #{tpu_custom_call.1} parent=1 // pred_fallthru
      _
    // Predicated region
    $region10: #{tpu_custom_call.1} parent=1 // pred_check
      _
    $region11: #{tpu_custom_call.1} parent=1 // pred_check_branch
      %33 = sbr.rel (0) target = $region13
    $region12: #{tpu_custom_call.1} parent=1 // pred_region
      %35 = dma.done [#allocation3], 256
    $region13: #{tpu_custom_call.1} parent=1 // pred_fallthru
      _
    // Predicated region
    $region14: #{tpu_custom_call.1} parent=1 // pred_check
      _
    $region15: #{tpu_custom_call.1} parent=1 // pred_check_branch
      %37 = sbr.rel (0) target = $region17
    $region16: #{tpu_custom_call.1} parent=1 // pred_region
      %39 = dma.done [#allocation6], 32
    $region17: #{tpu_custom_call.1} parent=1 // pred_fallthru
      _
    %v40 = vld [vmem:[#allocation2] sm:$0xff]
    %v41 = vld [vmem:[#allocation2 + $0x8] sm:$0xff]
    %42 = vst [vmem:[#allocation7] sm:$0xff] %v40
    %43 = vst [vmem:[#allocation7 + $0x8] sm:$0xff] %v41
    %v44 = vld [vmem:[#allocation5] sm:$0x3]
    %vm45 = vcmask 254976
    %46 = vst.msk [vmem:[#allocation7 + $0x10] sm:$0x3] %vm45, %v44
    // Predicated region
    $region18: #{tpu_custom_call.1} parent=1 // pred_check
      _
    $region19: #{tpu_custom_call.1} parent=1 // pred_check_branch
      %48 = sbr.rel (0) target = $region21
    $region20: #{tpu_custom_call.1} parent=1 // pred_region
      %50 = vsyncadd [#allocation4], 0
      %s52 = sshll.u32 [#allocation7], 4
      %s53 = int_to_ptr.vmem [resolvable:$true] %s52
      %s54 = sshll.u32 %s2, 4
      %s55 = int_to_ptr.hbm [resolvable:$true] %s54
      %57 = dma.vmem_to_hbm [thread:$0]  %s53, 288, %s55, [#allocation4]
    $region21: #{tpu_custom_call.1} parent=1 // pred_fallthru
      _
    // Predicated region
    $region22: #{tpu_custom_call.1} parent=1 // pred_check
      _
    $region23: #{tpu_custom_call.1} parent=1 // pred_check_branch
      %59 = sbr.rel (0) target = $region25
    $region24: #{tpu_custom_call.1} parent=1 // pred_region
      %61 = dma.done [#allocation4], 288
    $region25: #{tpu_custom_call.1} parent=1 // pred_fallthru
      _
    %62 = vsyncpa [#allocation3], 1
    %63 = vsyncpa [#allocation6], 1
    %64 = vsyncpa [#allocation4], 1

</llo_original>
